<compile_context>
chip_gen: v7x
topology: tpu7x:2x2x1
jax: 0.10.0
libtpu: 0.0.40
codegen_flags: <defaults>
</compile_context>

<pallas_src>
import jax
import jax.numpy as jnp
from jax.experimental import pallas as pl
from jax.experimental.pallas import tpu as pltpu


def _round_up(v, m):
    return ((v + m - 1) // m) * m


def _pad2d(a, shape):
    pads = tuple((0, s - d) for d, s in zip(a.shape, shape))
    if any(p[1] for p in pads):
        a = jnp.pad(a, pads)
    return a


def _sublane_align(dtype):
    # f32 -> 8 rows/vreg, bf16 -> 16 (2-per-sublane packing), int8/fp8 -> 32.
    return max(8, 32 // jnp.dtype(dtype).itemsize)


def _choose_tile(dim, pref, align):
    """Cover the axis in one aligned block when it fits under `pref`; otherwise
    pick an align-multiple near `pref` that minimizes edge padding (prefer the
    larger tile on ties: fewer ~0.35us grid steps)."""
    dim_al = _round_up(dim, align)
    if dim_al <= pref:
        return dim_al
    cands = []
    for d in (1, 2, 4):
        t = _round_up(max(pref // d, align), align)
        if t not in cands:
            cands.append(t)
    best = cands[0]
    best_pad = _round_up(dim, best)
    for t in cands[1:]:
        p = _round_up(dim, t)
        if p < best_pad:
            best, best_pad = t, p
    return best


# ----------------------------- kernels --------------------------------------


def _linear_kernel_fused(x_ref, w_ref, b_ref, o_ref):
    # Single K step: no scratch, no init/epilogue — bias fused into the store.
    o_ref[...] = (
        jnp.dot(x_ref[...], w_ref[...], preferred_element_type=jnp.float32)
        + b_ref[...].astype(jnp.float32)
    ).astype(o_ref.dtype)


def _linear_kernel_ksum_f32out(x_ref, w_ref, b_ref, o_ref):
    # Multiple K steps, f32 output: the (i, j) output block is invariant over k
    # (resident in VMEM), so accumulate directly into it; bias folded into the
    # k == 0 init so the last-K tail has no extra VALU add.
    k = pl.program_id(2)

    @pl.when(k == 0)
    def _():
        o_ref[...] = jnp.broadcast_to(b_ref[...], o_ref.shape).astype(o_ref.dtype)

    o_ref[...] += jnp.dot(x_ref[...], w_ref[...], preferred_element_type=jnp.float32)


def _linear_kernel_ksum_acc(x_ref, w_ref, b_ref, o_ref, acc_ref):
    # Multiple K steps, narrow output dtype: f32 VMEM accumulator, bias folded
    # into the k == 0 init, single cast+store epilogue on the last K step.
    k = pl.program_id(2)

    @pl.when(k == 0)
    def _():
        acc_ref[...] = jnp.broadcast_to(b_ref[...].astype(jnp.float32), acc_ref.shape)

    acc_ref[...] += jnp.dot(x_ref[...], w_ref[...], preferred_element_type=jnp.float32)

    @pl.when(k == pl.num_programs(2) - 1)
    def _():
        o_ref[...] = acc_ref[...].astype(o_ref.dtype)


# ----------------------------- wrapper ---------------------------------------


def prepare_linear_params(weight, bias):
    """One-time (parameter-load) prep: PyTorch weight [o_dim, i_dim] -> [i_dim,
    o_dim].  The weight is static across forward calls, so this transpose
    amortizes to zero and the kernel gets the canonical MXU RHS layout."""
    return jnp.asarray(weight).T, jnp.asarray(bias)


def linear_pallas(x, w_t, bias, *, tm=512, tn=512, tk=2048, w_buffer_count=2):
    """y = x @ w_t + bias, with w_t = weight.T of shape [i_dim, o_dim]."""
    B, K = x.shape
    K2, N = w_t.shape
    assert K == K2 and bias.shape == (N,)

    out_dtype = x.dtype
    m_align = _sublane_align(x.dtype)

    tm = _choose_tile(B, tm, m_align)
    tn = _choose_tile(N, tn, 128)
    tk = _choose_tile(K, tk, 128)

    Mp, Np, Kp = _round_up(B, tm), _round_up(N, tn), _round_up(K, tk)

    # v7x has 2 TensorCores per chip: expose >= 2 parallel (M, N) tiles when the
    # problem is big enough so the second core is not idle (harmless elsewhere).
    if (Mp // tm) * (Np // tn) < 2:
        if tn >= 256 and tn % 256 == 0:
            tn //= 2
        elif tm >= 2 * m_align and tm % (2 * m_align) == 0:
            tm //= 2

    gm, gn, gk = Mp // tm, Np // tn, Kp // tk

    x_p = _pad2d(x, (Mp, Kp))
    w_p = _pad2d(w_t, (Kp, Np))
    b_p = _pad2d(bias.reshape(1, N), (1, Np))

    use_acc = (gk > 1) and (out_dtype != jnp.float32)

    # Per-operand-dtype VMEM estimate: double-buffered tiles (+ sublane padding
    # on the bias row, + f32 accumulator when used), with margin, capped below
    # this generation's physical VMEM (leave headroom for Mosaic scratch).
    w_bufs = max(2, int(w_buffer_count))
    need = (
        tm * tk * jnp.dtype(x.dtype).itemsize * 2
        + tk * tn * jnp.dtype(w_t.dtype).itemsize * w_bufs
        + 8 * tn * jnp.dtype(bias.dtype).itemsize * 2
        + tm * tn * jnp.dtype(out_dtype).itemsize * 2
        + (tm * tn * 4 if use_acc else 0)
    )
    try:
        phys = int(pltpu.get_tpu_info().vmem_capacity_bytes)
    except Exception:
        phys = 64 * 1024 * 1024  # conservative (v7x per-TC capacity)
    cap = min(phys - 8 * 1024 * 1024, 100 * 1024 * 1024)
    vmem_limit = int(min(cap, max(int(1.5 * need), 32 * 1024 * 1024)))

    # Optional deeper buffering on the streamed weight operand (only when asked,
    # to keep the default path identical to the validated one).
    w_spec_kwargs = {}
    if w_buffer_count > 2:
        w_spec_kwargs["pipeline_mode"] = pl.Buffered(int(w_buffer_count))

    if gk == 1:
        grid = (gm, gn)
        in_specs = [
            pl.BlockSpec((tm, tk), lambda i, j: (i, 0)),                   # x
            pl.BlockSpec((tk, tn), lambda i, j: (0, j), **w_spec_kwargs),  # W^T
            pl.BlockSpec((1, tn), lambda i, j: (0, j)),                    # bias
        ]
        out_specs = pl.BlockSpec((tm, tn), lambda i, j: (i, j))
        scratch_shapes = []
        kernel = _linear_kernel_fused
        dims = ("parallel", "parallel")
    else:
        grid = (gm, gn, gk)
        in_specs = [
            pl.BlockSpec((tm, tk), lambda i, j, k: (i, k)),                   # x
            pl.BlockSpec((tk, tn), lambda i, j, k: (k, j), **w_spec_kwargs),  # W^T
            pl.BlockSpec((1, tn), lambda i, j, k: (0, j)),                    # bias
        ]
        out_specs = pl.BlockSpec((tm, tn), lambda i, j, k: (i, j))
        if use_acc:
            scratch_shapes = [pltpu.VMEM((tm, tn), jnp.float32)]
            kernel = _linear_kernel_ksum_acc
        else:
            scratch_shapes = []
            kernel = _linear_kernel_ksum_f32out
        dims = ("parallel", "parallel", "arbitrary")

    out = pl.pallas_call(
        kernel,
        out_shape=jax.ShapeDtypeStruct((Mp, Np), out_dtype),
        grid_spec=pltpu.PrefetchScalarGridSpec(
            num_scalar_prefetch=0,
            grid=grid,
            in_specs=in_specs,
            out_specs=out_specs,
            scratch_shapes=scratch_shapes,
        ),
        compiler_params=pltpu.CompilerParams(
            dimension_semantics=dims,
            vmem_limit_bytes=vmem_limit,
        ),
    )(x_p, w_p, b_p)

    return out[:B, :N]


if __name__ == "__main__":
    # Small, deterministic config matching the module: i_dim=32, o_dim=16, batch=8.
    # TODO(synk): at shapes this tiny the call is launch-overhead dominated and
    # cannot feed both v7x TensorCores; in production, batch many rows (or stack
    # several such linears) per pallas_call to raise arithmetic intensity.
    i_dim, o_dim, batch = 32, 16, 8

    key = jax.random.PRNGKey(0)
    kx, kw, kb = jax.random.split(key, 3)

    x = jax.random.normal(kx, (batch, i_dim), dtype=jnp.float32)
    bound = 1.0 / (i_dim ** 0.5)
    weight = jax.random.uniform(kw, (o_dim, i_dim), jnp.float32, -bound, bound)
    bias = jax.random.uniform(kb, (o_dim,), jnp.float32, -bound, bound)

    # One-time parameter prep (the transpose lives at load time, not per call).
    w_t, b = prepare_linear_params(weight, bias)

    y = linear_pallas(x, w_t, b)
    jax.block_until_ready(y)

    # Correctness check against plain-JAX reference of the PyTorch forward.
    y_ref = x @ weight.T + bias
    assert y.shape == (batch, o_dim)
    assert jnp.allclose(y, y_ref, atol=1e-5, rtol=1e-5)

    print("KERNEL_OK")
</pallas_src>

<mosaic_0001>
module attributes {stable_mosaic.version = 11 : i64} {
  func.func @_linear_kernel_fused(%arg0: i32, %arg1: i32, %arg2: memref<8x128xf32, #tpu.memory_space<vmem>>, %arg3: memref<128x128xf32, #tpu.memory_space<vmem>>, %arg4: memref<1x128xf32, #tpu.memory_space<vmem>>, %arg5: memref<8x128xf32, #tpu.memory_space<vmem>>) attributes {dimension_semantics = [#tpu.dimension_semantics<parallel>, #tpu.dimension_semantics<parallel>], iteration_bounds = array<i64: 1, 1>, scalar_prefetch = 0 : i64, scratch_operands = 0 : i64, tpu.core_type = #tpu.core_type<tc>, window_params = [{transform_indices = @transform_0, window_bounds = array<i64: 8, 128>}, {transform_indices = @transform_1, window_bounds = array<i64: 128, 128>}, {transform_indices = @transform_2, window_bounds = array<i64: 1, 128>}, {transform_indices = @transform_3, window_bounds = array<i64: 8, 128>}]} {
    %c0 = arith.constant 0 : index
    %c0_0 = arith.constant 0 : index
    %0 = vector.load %arg2[%c0, %c0_0] : memref<8x128xf32, #tpu.memory_space<vmem>>, vector<8x128xf32>
    %c0_1 = arith.constant 0 : index
    %c0_2 = arith.constant 0 : index
    %1 = vector.load %arg3[%c0_1, %c0_2] : memref<128x128xf32, #tpu.memory_space<vmem>>, vector<128x128xf32>
    %cst = arith.constant dense<0.000000e+00> : vector<8x128xf32>
    %2 = tpu.matmul %0, %1, %cst {dimension_numbers = #tpu.dot_dimension_numbers<[1], [0], [0], [1], [0, 0, 1, 1], [], []>} : vector<8x128xf32>, vector<128x128xf32>, vector<8x128xf32> -> vector<8x128xf32>
    %c0_3 = arith.constant 0 : index
    %c0_4 = arith.constant 0 : index
    %3 = vector.load %arg4[%c0_3, %c0_4] : memref<1x128xf32, #tpu.memory_space<vmem>>, vector<1x128xf32>
    %4 = vector.broadcast %3 : vector<1x128xf32> to vector<8x128xf32>
    %5 = arith.addf %2, %4 : vector<8x128xf32>
    %c0_5 = arith.constant 0 : index
    %c0_6 = arith.constant 0 : index
    %6 = vector.load %arg5[%c0_5, %c0_6] : memref<8x128xf32, #tpu.memory_space<vmem>>, vector<8x128xf32>
    tpu.vector_store %arg5[%c0_5, %c0_6], %5 {strides = array<i32>} : memref<8x128xf32, #tpu.memory_space<vmem>>, vector<8x128xf32>,
    return
  }
  func.func @transform_0(%arg0: i32, %arg1: i32) -> (i32, i32) {
    %c0_i32 = arith.constant 0 : i32
    %c0_i32_0 = arith.constant 0 : i32
    return %arg0, %c0_i32 : i32, i32
  }
  func.func @transform_1(%arg0: i32, %arg1: i32) -> (i32, i32) {
    %c0_i32 = arith.constant 0 : i32
    %c0_i32_0 = arith.constant 0 : i32
    return %c0_i32, %arg1 : i32, i32
  }
  func.func @transform_2(%arg0: i32, %arg1: i32) -> (i32, i32) {
    %c0_i32 = arith.constant 0 : i32
    %c0_i32_0 = arith.constant 0 : i32
    return %c0_i32, %arg1 : i32, i32
  }
  func.func @transform_3(%arg0: i32, %arg1: i32) -> (i32, i32) {
    %c0_i32 = arith.constant 0 : i32
    return %arg0, %arg1 : i32, i32
  }
}

</mosaic_0001>

<llo_original>
// kernel: tpu_custom_call.1
$region0: #{tpu_custom_call.1}
  #allocation0 [shape = 'u32[]', space=smem, size = 0x4, offset = 0x4, fixed_abs, tag = 'smem constant byte address 0x4 - core index']
  #allocation1 [shape = 'u32[144,128]{1,0:T(1,128)}', space=vmem, size = 0x12000, scoped, tag = 'internal scratch']
  %s0 = inlined_call_operand.hbm [shape: f32[8,128], index: 0, kind: input, shape index: {}]
  %s1 = inlined_call_operand.hbm [shape: f32[128,128], index: 1, kind: input, shape index: {}]
  %s2 = inlined_call_operand.vmem [shape: f32[1,128], index: 2, kind: input, shape index: {}]
  %s3 = inlined_call_operand.hbm [shape: f32[8,128], index: 3, kind: output, shape index: {}]
  %s4 = sld [smem:[#allocation0]]
  $region30: #{tpu_custom_call.1} parent=0
    _
  %s6 = ssub.s32 1, %s4
  %s7 = scalar_select 0, %s6, %s4
  $region1: #{tpu_custom_call.1} parent=0
    #allocation2 [shape = 'u8[4096]{0}', space=vmem, size = 0x1000, scoped, tag = 'input window, operand 0, single buffered']
    #allocation3 [shape = 's32[1]{0}', space=sflag, size = 0x4, scoped, tag = 'scoped memory for tpu_custom_call.1']
    #allocation4 [shape = 's32[1]{0}', space=sflag, size = 0x4, scoped, tag = 'scoped memory for tpu_custom_call.1']
    #allocation5 [shape = 'u8[65536]{0}', space=vmem, size = 0x10000, scoped, tag = 'input window, operand 1, single buffered']
    #allocation6 [shape = 's32[1]{0}', space=sflag, size = 0x4, scoped, tag = 'scoped memory for tpu_custom_call.1']
    #allocation7 [shape = 'u8[4096]{0}', space=vmem, size = 0x1000, scoped, tag = 'output window, operand 0, single buffered']
    %8 = vsyncpa [#allocation3], 0
    %9 = vsyncpa [#allocation6], 0
    %10 = vsyncpa [#allocation4], 0
    // Predicated region
    $region2: #{tpu_custom_call.1} parent=1 // pred_check
      _
    $region3: #{tpu_custom_call.1} parent=1 // pred_check_branch
      %12 = sbr.rel (0) target = $region5
    $region4: #{tpu_custom_call.1} parent=1 // pred_region
      %s14 = ssub.s32 128, 128
      %15 = vsyncadd [#allocation3], %s14
      %s17 = sshll.u32 [#allocation2], 4
      %s18 = int_to_ptr.vmem [resolvable:$true] %s17
      %20 = dma.hbm_to_vmem [thread:$0]  %s0, 128, %s18, [#allocation3]
    $region5: #{tpu_custom_call.1} parent=1 // pred_fallthru
      _
    // Predicated region
    $region6: #{tpu_custom_call.1} parent=1 // pred_check
      _
    $region7: #{tpu_custom_call.1} parent=1 // pred_check_branch
      %22 = sbr.rel (0) target = $region9
    $region8: #{tpu_custom_call.1} parent=1 // pred_region
      %s24 = ssub.s32 2048, 2048
      %25 = vsyncadd [#allocation6], %s24
      %s26 = sshll.u32 [#allocation5], 4
      %s27 = int_to_ptr.vmem [resolvable:$true] %s26
      %32 = dma.hbm_to_vmem [thread:$0]  %s1, 2048, %s27, [#allocation6], 128, 128, 8
    $region9: #{tpu_custom_call.1} parent=1 // pred_fallthru
      _
    // Predicated region
    $region10: #{tpu_custom_call.1} parent=1 // pred_check
      _
    $region11: #{tpu_custom_call.1} parent=1 // pred_check_branch
      %34 = sbr.rel (0) target = $region13
    $region12: #{tpu_custom_call.1} parent=1 // pred_region
      _
    $region13: #{tpu_custom_call.1} parent=1 // pred_fallthru
      _
    // Predicated region
    $region14: #{tpu_custom_call.1} parent=1 // pred_check
      _
    $region15: #{tpu_custom_call.1} parent=1 // pred_check_branch
      %36 = sbr.rel (0) target = $region17
    $region16: #{tpu_custom_call.1} parent=1 // pred_region
      %37 = dma.done [#allocation3], 128
    $region17: #{tpu_custom_call.1} parent=1 // pred_fallthru
      _
    // Predicated region
    $region18: #{tpu_custom_call.1} parent=1 // pred_check
      _
    $region19: #{tpu_custom_call.1} parent=1 // pred_check_branch
      %39 = sbr.rel (0) target = $region21
    $region20: #{tpu_custom_call.1} parent=1 // pred_region
      %40 = dma.done [#allocation6], 2048
    $region21: #{tpu_custom_call.1} parent=1 // pred_fallthru
      _
    %v41 = vld [vmem:[#allocation2] sm:$0xff]
    %v42 = vld [vmem:[#allocation5] sm:$0xff]
    %v43 = vld [vmem:[#allocation5 + $0x8] sm:$0xff]
    %v44 = vld [vmem:[#allocation5 + $0x10] sm:$0xff]
    %v45 = vld [vmem:[#allocation5 + $0x18] sm:$0xff]
    %v46 = vld [vmem:[#allocation5 + $0x20] sm:$0xff]
    %v47 = vld [vmem:[#allocation5 + $0x28] sm:$0xff]
    %v48 = vld [vmem:[#allocation5 + $0x30] sm:$0xff]
    %v49 = vld [vmem:[#allocation5 + $0x38] sm:$0xff]
    %v50 = vld [vmem:[#allocation5 + $0x40] sm:$0xff]
    %v51 = vld [vmem:[#allocation5 + $0x48] sm:$0xff]
    %v52 = vld [vmem:[#allocation5 + $0x50] sm:$0xff]
    %v53 = vld [vmem:[#allocation5 + $0x58] sm:$0xff]
    %v54 = vld [vmem:[#allocation5 + $0x60] sm:$0xff]
    %v55 = vld [vmem:[#allocation5 + $0x68] sm:$0xff]
    %v56 = vld [vmem:[#allocation5 + $0x70] sm:$0xff]
    %v57 = vld [vmem:[#allocation5 + $0x78] sm:$0xff]
    %v58 = vld [vmem:[%s2] sm:$0x1]
    %v60 = vlaneseq
    %v61 = vshrl.u32 %v60, 7
    %v62 = vsub.s32 0, %v61
    %v63 = vrot.slane %v58, %v62
    %65 = vmatprep.subr.mxu0 0.0
    %66 = vmatpush1.msra.mxu0 %v42
    %67 = vmatprep.subr.mxu0 0.0
    %68 = vmatpush1.msra.mxu0 %v43
    %69 = vmatprep.subr.mxu0 0.0
    %70 = vmatpush1.msra.mxu0 %v44
    %71 = vmatprep.subr.mxu0 0.0
    %72 = vmatpush1.msra.mxu0 %v45
    %73 = vmatprep.subr.mxu0 0.0
    %74 = vmatpush1.msra.mxu0 %v46
    %75 = vmatprep.subr.mxu0 0.0
    %76 = vmatpush1.msra.mxu0 %v47
    %77 = vmatprep.subr.mxu0 0.0
    %78 = vmatpush1.msra.mxu0 %v48
    %79 = vmatprep.subr.mxu0 0.0
    %80 = vmatpush1.msra.mxu0 %v49
    %81 = vmatprep.subr.mxu0 0.0
    %82 = vmatpush1.msra.mxu0 %v50
    %83 = vmatprep.subr.mxu0 0.0
    %84 = vmatpush1.msra.mxu0 %v51
    %85 = vmatprep.subr.mxu0 0.0
    %86 = vmatpush1.msra.mxu0 %v52
    %87 = vmatprep.subr.mxu0 0.0
    %88 = vmatpush1.msra.mxu0 %v53
    %89 = vmatprep.subr.mxu0 0.0
    %90 = vmatpush1.msra.mxu0 %v54
    %91 = vmatprep.subr.mxu0 0.0
    %92 = vmatpush1.msra.mxu0 %v55
    %93 = vmatprep.subr.mxu0 0.0
    %94 = vmatpush1.msra.mxu0 %v56
    %95 = vmatprep.subr.mxu0 0.0
    %96 = vmatpush1.msra.mxu0 %v57
    %97 = vmatprep.subr.mxu0 0.0
    %98 = vmatpush1.msra.mxu0 0.0
    %99 = vmatprep.subr.mxu0 0.0
    %100 = vmatpush1.msra.mxu0 0.0
    %101 = vmatprep.subr.mxu0 0.0
    %102 = vmatpush1.msra.mxu0 0.0
    %103 = vmatprep.subr.mxu0 0.0
    %104 = vmatpush1.msra.mxu0 0.0
    %105 = vmatprep.subr.mxu0 0.0
    %106 = vmatpush1.msra.mxu0 0.0
    %107 = vmatprep.subr.mxu0 0.0
    %108 = vmatpush1.msra.mxu0 0.0
    %109 = vmatprep.subr.mxu0 0.0
    %110 = vmatpush1.msra.mxu0 0.0
    %111 = vmatprep.subr.mxu0 0.0
    %112 = vmatpush1.msra.mxu0 0.0
    %113 = vmatprep.subr.mxu0 0.0
    %114 = vmatpush1.msra.mxu0 0.0
    %115 = vmatprep.subr.mxu0 0.0
    %116 = vmatpush1.msra.mxu0 0.0
    %117 = vmatprep.subr.mxu0 0.0
    %118 = vmatpush1.msra.mxu0 0.0
    %119 = vmatprep.subr.mxu0 0.0
    %120 = vmatpush1.msra.mxu0 0.0
    %121 = vmatprep.subr.mxu0 0.0
    %122 = vmatpush1.msra.mxu0 0.0
    %123 = vmatprep.subr.mxu0 0.0
    %124 = vmatpush1.msra.mxu0 0.0
    %125 = vmatprep.subr.mxu0 0.0
    %126 = vmatpush1.msra.mxu0 0.0
    %127 = vmatprep.subr.mxu0 0.0
    %128 = vmatpush1.msra.mxu0 0.0
    %129 = vmatprep.mubr.f32.mxu0 0.0
    %130 = vmatmul.mubr.f32.gmra.mrb[0].mxu0 %v41
    %v131 = vpop.f32.mrb[0].mxu0
    %v132 = vadd.f32 %v63, %v131
    %v133 = vpop.f32.mrb[0].mxu0
    %134 = vdwg.mxu0
    %135 = vst [vmem:[#allocation7] sm:$0xff] %v132
    // Predicated region
    $region22: #{tpu_custom_call.1} parent=1 // pred_check
      _
    $region23: #{tpu_custom_call.1} parent=1 // pred_check_branch
      %137 = sbr.rel (0) target = $region25
    $region24: #{tpu_custom_call.1} parent=1 // pred_region
      %s139 = ssub.s32 128, 128
      %140 = vsyncadd [#allocation4], %s139
      %s142 = sshll.u32 [#allocation7], 4
      %s143 = int_to_ptr.vmem [resolvable:$true] %s142
      %145 = dma.vmem_to_hbm [thread:$0]  %s143, 128, %s3, [#allocation4]
    $region25: #{tpu_custom_call.1} parent=1 // pred_fallthru
      _
    // Predicated region
    $region26: #{tpu_custom_call.1} parent=1 // pred_check
      _
    $region27: #{tpu_custom_call.1} parent=1 // pred_check_branch
      %147 = sbr.rel (0) target = $region29
    $region28: #{tpu_custom_call.1} parent=1 // pred_region
      %148 = dma.done [#allocation4], 128
    $region29: #{tpu_custom_call.1} parent=1 // pred_fallthru
      _
    %149 = vsyncpa [#allocation3], 1
    %150 = vsyncpa [#allocation6], 1
    %151 = vsyncpa [#allocation4], 1

</llo_original>
